<compile_context>
chip_gen: v6e
topology: v6e:2x2x1
jax: 0.10.0
libtpu: 0.0.40
codegen_flags: <defaults>
</compile_context>

<pallas_src>
import jax
import jax.numpy as jnp
from jax.experimental import pallas as pl
from jax.experimental.pallas import tpu as pltpu

LANES = 128
NUM_ACC = 5          # [bce*m, m, sig*m*t*m, sig*m, t*m]
ACC_ROWS = 8         # NUM_ACC padded to a full 8-sublane vreg row block
MAX_BLOCK_ROWS = 8192


def _default_core_split():
    """2-way megacore split only on chips with 2 TensorCores (v7x); else 1."""
    try:
        kind = jax.devices()[0].device_kind.lower()
    except Exception:
        return 1
    return 2 if "7" in kind else 1


def _make_kernel(block_rows, rows, steps_per_core, needs_mask, has_core_axis,
                 approx_sigmoid):
    zero_pad_rows = ACC_ROWS - NUM_ACC

    def accumulate(acc_ref, p, t, m):
        p = p.astype(jnp.float32)
        t = t.astype(jnp.float32)
        m = m.astype(jnp.float32)

        # One exp shared by softplus and sigmoid (EUP is the scarce unit).
        e = jnp.exp(-jnp.abs(p))                                  # in (0, 1]
        # log1p(e)-accurate softplus using only exp/log (series for tiny e).
        softplus = jnp.where(e < 1e-3, e - 0.5 * e * e, jnp.log(1.0 + e))
        # Stable BCE-with-logits: max(p,0) - p*t + log(1+exp(-|p|)).
        bce = jnp.maximum(p, 0.0) - p * t + softplus
        # sigmoid(p) = where(p>=0, 1, e) / (1 + e).
        sig = jnp.where(p >= 0.0, 1.0, e) * pl.reciprocal(
            1.0 + e, approx=approx_sigmoid)

        sm = sig * m
        tm = t * m

        # Single aligned (8,128) read-modify-write of the resident VMEM
        # accumulator block; cross-lane reduction happens once, in the wrapper.
        upd = jnp.concatenate([
            jnp.sum(bce * m, axis=0, keepdims=True),   # masked BCE numerator
            jnp.sum(m, axis=0, keepdims=True),         # mask count
            jnp.sum(sm * tm, axis=0, keepdims=True),   # intersection
            jnp.sum(sm, axis=0, keepdims=True),        # sum(sigmoid * mask)
            jnp.sum(tm, axis=0, keepdims=True),        # sum(target * mask)
            jnp.zeros((zero_pad_rows, LANES), jnp.float32),
        ], axis=0)
        acc_ref[...] += upd

    def kernel(p_ref, t_ref, m_ref, acc_ref):
        if has_core_axis:
            c = pl.program_id(0)   # core-split axis ("parallel")
            i = pl.program_id(1)   # reduction axis  ("arbitrary")
        else:
            c = 0
            i = pl.program_id(0)   # reduction axis only

        @pl.when(i == 0)
        def _():
            acc_ref[...] = jnp.zeros_like(acc_ref)

        if needs_mask:
            # Runtime gate: only ragged / duplicated (clamped) blocks pay for
            # the iota + wheres; interior blocks take the unmasked fast path.
            row0 = (c * steps_per_core + i) * block_rows
            overruns = row0 + block_rows > rows

            @pl.when(jnp.logical_not(overruns))
            def _():
                accumulate(acc_ref, p_ref[...], t_ref[...], m_ref[...])

            @pl.when(overruns)
            def _():
                # Full 3-way masking: the ragged last block's out-of-bounds
                # rows are stale VMEM (can decode as NaN/Inf), so p/t/m must
                # all be zeroed, not just m.
                rid = row0 + jax.lax.broadcasted_iota(
                    jnp.int32, (block_rows, LANES), 0)
                valid = rid < rows
                p = jnp.where(valid, p_ref[...].astype(jnp.float32), 0.0)
                t = jnp.where(valid, t_ref[...].astype(jnp.float32), 0.0)
                m = jnp.where(valid, m_ref[...].astype(jnp.float32), 0.0)
                accumulate(acc_ref, p, t, m)
        else:
            accumulate(acc_ref, p_ref[...], t_ref[...], m_ref[...])

    return kernel


def hybird_v4_loss(pred, target, mask, l1: float = 1.0, eps: float = 1e-7, *,
                   max_block_rows: int = MAX_BLOCK_ROWS,
                   core_split=None, approx_sigmoid: bool = False):
    """HybirdV4 forward. pred: logits; target/mask may be bf16/int8 (cast in-kernel)."""
    total = pred.size
    rows = total // LANES
    n_aligned = rows * LANES

    flat = tuple(x.reshape(-1) for x in (pred, target, mask))
    sums = jnp.zeros((NUM_ACC,), jnp.float32)

    if rows > 0:
        heads = tuple(f if f.shape[0] == n_aligned else f[:n_aligned]
                      for f in flat)
        p2, t2, m2 = (h.reshape(rows, LANES) for h in heads)

        block_rows = rows if rows <= max_block_rows else max_block_rows
        num_blocks = pl.cdiv(rows, block_rows)

        if core_split is None:
            core_split = _default_core_split()
        core_split = max(1, min(int(core_split), num_blocks))
        has_core_axis = core_split > 1

        if has_core_axis:
            steps_per_core = pl.cdiv(num_blocks, core_split)
            grid = (core_split, steps_per_core)
            dim_sem = ("parallel", "arbitrary")
            # Clamp so duplicated / overflow blocks fetch valid memory; their
            # contribution is zeroed in-kernel via the row mask.
            in_map = lambda c, i: (
                jnp.minimum(c * steps_per_core + i, num_blocks - 1), 0)
            out_map = lambda c, i: (c, 0, 0)
        else:
            steps_per_core = num_blocks
            grid = (num_blocks,)
            dim_sem = ("arbitrary",)
            in_map = lambda i: (i, 0)
            out_map = lambda i: (0, 0, 0)

        needs_mask = (core_split * steps_per_core * block_rows != rows)

        in_spec = pl.BlockSpec((block_rows, LANES), in_map)
        # Per-core resident accumulator block (squeezed leading core dim).
        out_spec = pl.BlockSpec((None, ACC_ROWS, LANES), out_map)

        in_block_bytes = sum(block_rows * LANES * x.dtype.itemsize
                             for x in (p2, t2, m2))
        out_bytes = core_split * ACC_ROWS * LANES * 4
        # Double-buffered inputs + outputs + headroom; fits v5e/v6e/v7x VMEM.
        vmem_limit = 2 * in_block_bytes + 2 * out_bytes + (4 << 20)
        vmem_limit = int(min(max(vmem_limit, 16 << 20), 48 << 20))

        cost = pl.CostEstimate(
            flops=20 * total,
            transcendentals=3 * total,
            bytes_accessed=int(sum(x.size * x.dtype.itemsize
                                   for x in (p2, t2, m2)) + out_bytes),
        )

        partials = pl.pallas_call(
            _make_kernel(block_rows, rows, steps_per_core, needs_mask,
                         has_core_axis, approx_sigmoid),
            out_shape=jax.ShapeDtypeStruct((core_split, ACC_ROWS, LANES),
                                           jnp.float32),
            grid_spec=pltpu.PrefetchScalarGridSpec(
                num_scalar_prefetch=0,
                grid=grid,
                in_specs=[in_spec, in_spec, in_spec],
                out_specs=out_spec,
            ),
            compiler_params=pltpu.CompilerParams(
                dimension_semantics=dim_sem,
                vmem_limit_bytes=vmem_limit),
            cost_estimate=cost,
        )(p2, t2, m2)

        sums = sums + jnp.sum(partials, axis=(0, 2))[:NUM_ACC]

    if n_aligned < total:
        # <128-element ragged tail handled in plain JAX (avoids padding --
        # and therefore copying -- all three full tensors for a few elements).
        tp, tt, tm_ = (f[n_aligned:].astype(jnp.float32) for f in flat)
        e = jnp.exp(-jnp.abs(tp))
        bce = jnp.maximum(tp, 0.0) - tp * tt + jnp.log1p(e)
        sig = jax.nn.sigmoid(tp)
        sm = sig * tm_
        tmv = tt * tm_
        sums = sums + jnp.stack([
            jnp.sum(bce * tm_), jnp.sum(tm_), jnp.sum(sm * tmv),
            jnp.sum(sm), jnp.sum(tmv)])

    bce_sum, mask_sum, inter, psum, tsum = (sums[k] for k in range(NUM_ACC))

    # MaskBinaryCrossEntropy (module default weight=None).
    bce_loss = bce_sum / (mask_sum + eps)

    # CustomiseJaccardLoss (soft IoU on sigmoid(pred), masked).
    union = psum + tsum - inter
    jaccard_loss = 1.0 - (inter + eps) / (union + eps)

    return (bce_loss + l1 * jaccard_loss) / (1.0 + l1)


def _reference_loss(pred, target, mask, l1=1.0, eps=1e-7):
    p = pred.astype(jnp.float32)
    t = target.astype(jnp.float32)
    m = mask.astype(jnp.float32)
    bce = jnp.maximum(p, 0.0) - p * t + jnp.log1p(jnp.exp(-jnp.abs(p)))
    bce_loss = jnp.sum(bce * m) / (jnp.sum(m) + eps)
    s = jax.nn.sigmoid(p) * m
    tm = t * m
    inter = jnp.sum(s * tm)
    union = jnp.sum(s) + jnp.sum(tm) - inter
    jac = 1.0 - (inter + eps) / (union + eps)
    return (bce_loss + l1 * jac) / (1.0 + l1)


if __name__ == "__main__":
    key = jax.random.PRNGKey(0)
    k1, k2, k3 = jax.random.split(key, 3)
    B, C, H, W = 2, 4, 16, 16                      # NCHW, matches PyTorch convention
    pred = jax.random.normal(k1, (B, C, H, W), jnp.float32)   # logits, f32
    # target / mask are exact 0/1 -> feed as bf16 to cut HBM bytes; cast in-kernel.
    target = (jax.random.uniform(k2, (B, C, H, W)) > 0.5).astype(jnp.bfloat16)
    mask = (jax.random.uniform(k3, (B, C, H, W)) > 0.3).astype(jnp.bfloat16)

    loss = hybird_v4_loss(pred, target, mask, l1=1.0)
    loss = jax.block_until_ready(loss)

    ref = _reference_loss(pred, target, mask, l1=1.0)
    assert jnp.allclose(loss, ref, atol=1e-4, rtol=1e-4), (loss, ref)

    print("KERNEL_OK")
</pallas_src>

<mosaic_0001>
module attributes {stable_mosaic.version = 11 : i64} {
  func.func @kernel(%arg0: i32, %arg1: memref<16x128xf32, #tpu.memory_space<vmem>>, %arg2: memref<16x128xbf16, #tpu.memory_space<vmem>>, %arg3: memref<16x128xbf16, #tpu.memory_space<vmem>>, %arg4: memref<1x8x128xf32, #tpu.memory_space<vmem>>) attributes {dimension_semantics = [#tpu.dimension_semantics<arbitrary>], iteration_bounds = array<i64: 1>, scalar_prefetch = 0 : i64, scratch_operands = 0 : i64, tpu.core_type = #tpu.core_type<tc>, window_params = [{transform_indices = @transform_0, window_bounds = array<i64: 16, 128>}, {transform_indices = @transform_1, window_bounds = array<i64: 16, 128>}, {transform_indices = @transform_2, window_bounds = array<i64: 16, 128>}, {pipeline_mode = #tpu.pipeline_mode<synchronous>, transform_indices = @transform_3, window_bounds = array<i64: 1, 8, 128>}]} {
    %c0_i32 = arith.constant 0 : i32
    %0 = arith.cmpi eq, %arg0, %c0_i32 : i32
    %1 = arith.extui %0 : i1 to i32
    %c0_i32_0 = arith.constant 0 : i32
    %2 = arith.cmpi ne, %1, %c0_i32_0 : i32
    scf.if %2 {
      %cst_25 = arith.constant 0.000000e+00 : f32
      %57 = vector.broadcast %cst_25 : f32 to vector<8x128xf32>
      %c0_26 = arith.constant 0 : index
      %c0_27 = arith.constant 0 : index
      %c0_28 = arith.constant 0 : index
      %58 = vector.load %arg4[%c0_26, %c0_27, %c0_28] : memref<1x8x128xf32, #tpu.memory_space<vmem>>, vector<1x8x128xf32>
      %59 = vector.shape_cast %58 : vector<1x8x128xf32> to vector<8x128xf32>
      %60 = vector.shape_cast %57 : vector<8x128xf32> to vector<1x8x128xf32>
      tpu.vector_store %arg4[%c0_26, %c0_27, %c0_28], %60 {strides = array<i32>} : memref<1x8x128xf32, #tpu.memory_space<vmem>>, vector<1x8x128xf32>,
    } else {
    }
    %c0 = arith.constant 0 : index
    %c0_1 = arith.constant 0 : index
    %3 = vector.load %arg1[%c0, %c0_1] : memref<16x128xf32, #tpu.memory_space<vmem>>, vector<16x128xf32>
    %c0_2 = arith.constant 0 : index
    %c0_3 = arith.constant 0 : index
    %4 = vector.load %arg2[%c0_2, %c0_3] : memref<16x128xbf16, #tpu.memory_space<vmem>>, vector<16x128xbf16>
    %c0_4 = arith.constant 0 : index
    %c0_5 = arith.constant 0 : index
    %5 = vector.load %arg3[%c0_4, %c0_5] : memref<16x128xbf16, #tpu.memory_space<vmem>>, vector<16x128xbf16>
    %6 = arith.extf %4 : vector<16x128xbf16> to vector<16x128xf32>
    %7 = arith.extf %5 : vector<16x128xbf16> to vector<16x128xf32>
    %8 = math.absf %3 : vector<16x128xf32>
    %cst = arith.constant 0.000000e+00 : f32
    %9 = vector.broadcast %cst : f32 to vector<16x128xf32>
    %10 = arith.subf %9, %8 : vector<16x128xf32>
    %11 = math.exp %10 : vector<16x128xf32>
    %cst_6 = arith.constant 1.000000e-03 : f32
    %12 = vector.broadcast %cst_6 : f32 to vector<16x128xf32>
    %13 = arith.cmpf olt, %11, %12 : vector<16x128xf32>
    %cst_7 = arith.constant 5.000000e-01 : f32
    %14 = vector.broadcast %cst_7 : f32 to vector<16x128xf32>
    %15 = arith.mulf %14, %11 : vector<16x128xf32>
    %16 = arith.mulf %15, %11 : vector<16x128xf32>
    %17 = arith.subf %11, %16 : vector<16x128xf32>
    %cst_8 = arith.constant 1.000000e+00 : f32
    %18 = vector.broadcast %cst_8 : f32 to vector<16x128xf32>
    %19 = arith.addf %18, %11 : vector<16x128xf32>
    %20 = math.log %19 : vector<16x128xf32>
    %21 = arith.select %13, %17, %20 : vector<16x128xi1>, vector<16x128xf32>
    %cst_9 = arith.constant 0.000000e+00 : f32
    %22 = vector.broadcast %cst_9 : f32 to vector<16x128xf32>
    %23 = arith.maximumf %3, %22 : vector<16x128xf32>
    %24 = arith.mulf %3, %6 : vector<16x128xf32>
    %25 = arith.subf %23, %24 : vector<16x128xf32>
    %26 = arith.addf %25, %21 : vector<16x128xf32>
    %cst_10 = arith.constant 0.000000e+00 : f32
    %27 = vector.broadcast %cst_10 : f32 to vector<16x128xf32>
    %28 = arith.cmpf oge, %3, %27 : vector<16x128xf32>
    %cst_11 = arith.constant 1.000000e+00 : f32
    %29 = vector.broadcast %cst_11 : f32 to vector<16x128xf32>
    %30 = arith.select %28, %29, %11 : vector<16x128xi1>, vector<16x128xf32>
    %cst_12 = arith.constant 1.000000e+00 : f32
    %31 = vector.broadcast %cst_12 : f32 to vector<16x128xf32>
    %32 = arith.addf %31, %11 : vector<16x128xf32>
    %33 = tpu.reciprocal %32 : vector<16x128xf32> -> vector<16x128xf32>
    %34 = arith.mulf %30, %33 : vector<16x128xf32>
    %35 = arith.mulf %34, %7 : vector<16x128xf32>
    %36 = arith.mulf %6, %7 : vector<16x128xf32>
    %37 = arith.mulf %26, %7 : vector<16x128xf32>
    %cst_13 = arith.constant dense<0.000000e+00> : vector<128xf32>
    %38 = vector.multi_reduction <add>, %37, %cst_13 [0] : vector<16x128xf32> to vector<128xf32>
    %39 = vector.shape_cast %38 : vector<128xf32> to vector<1x128xf32>
    %cst_14 = arith.constant dense<0.000000e+00> : vector<128xf32>
    %40 = vector.multi_reduction <add>, %7, %cst_14 [0] : vector<16x128xf32> to vector<128xf32>
    %41 = vector.shape_cast %40 : vector<128xf32> to vector<1x128xf32>
    %42 = arith.mulf %35, %36 : vector<16x128xf32>
    %cst_15 = arith.constant dense<0.000000e+00> : vector<128xf32>
    %43 = vector.multi_reduction <add>, %42, %cst_15 [0] : vector<16x128xf32> to vector<128xf32>
    %44 = vector.shape_cast %43 : vector<128xf32> to vector<1x128xf32>
    %cst_16 = arith.constant dense<0.000000e+00> : vector<128xf32>
    %45 = vector.multi_reduction <add>, %35, %cst_16 [0] : vector<16x128xf32> to vector<128xf32>
    %46 = vector.shape_cast %45 : vector<128xf32> to vector<1x128xf32>
    %cst_17 = arith.constant dense<0.000000e+00> : vector<128xf32>
    %47 = vector.multi_reduction <add>, %36, %cst_17 [0] : vector<16x128xf32> to vector<128xf32>
    %48 = vector.shape_cast %47 : vector<128xf32> to vector<1x128xf32>
    %cst_18 = arith.constant 0.000000e+00 : f32
    %49 = vector.broadcast %cst_18 : f32 to vector<3x128xf32>
    %50 = tpu.concatenate %39, %41, %44, %46, %48, %49 in 0 : vector<1x128xf32>, vector<1x128xf32>, vector<1x128xf32>, vector<1x128xf32>, vector<1x128xf32>, vector<3x128xf32> -> vector<8x128xf32>
    %c0_19 = arith.constant 0 : index
    %c0_20 = arith.constant 0 : index
    %c0_21 = arith.constant 0 : index
    %51 = vector.load %arg4[%c0_19, %c0_20, %c0_21] : memref<1x8x128xf32, #tpu.memory_space<vmem>>, vector<1x8x128xf32>
    %52 = vector.shape_cast %51 : vector<1x8x128xf32> to vector<8x128xf32>
    %53 = arith.addf %52, %50 : vector<8x128xf32>
    %c0_22 = arith.constant 0 : index
    %c0_23 = arith.constant 0 : index
    %c0_24 = arith.constant 0 : index
    %54 = vector.load %arg4[%c0_22, %c0_23, %c0_24] : memref<1x8x128xf32, #tpu.memory_space<vmem>>, vector<1x8x128xf32>
    %55 = vector.shape_cast %54 : vector<1x8x128xf32> to vector<8x128xf32>
    %56 = vector.shape_cast %53 : vector<8x128xf32> to vector<1x8x128xf32>
    tpu.vector_store %arg4[%c0_22, %c0_23, %c0_24], %56 {strides = array<i32>} : memref<1x8x128xf32, #tpu.memory_space<vmem>>, vector<1x8x128xf32>,
    return
  }
  func.func @transform_0(%arg0: i32) -> (i32, i32) {
    %c0_i32 = arith.constant 0 : i32
    %c0_i32_0 = arith.constant 0 : i32
    return %arg0, %c0_i32 : i32, i32
  }
  func.func @transform_1(%arg0: i32) -> (i32, i32) {
    %c0_i32 = arith.constant 0 : i32
    %c0_i32_0 = arith.constant 0 : i32
    return %arg0, %c0_i32 : i32, i32
  }
  func.func @transform_2(%arg0: i32) -> (i32, i32) {
    %c0_i32 = arith.constant 0 : i32
    %c0_i32_0 = arith.constant 0 : i32
    return %arg0, %c0_i32 : i32, i32
  }
  func.func @transform_3(%arg0: i32) -> (i32, i32, i32) {
    %c0_i32 = arith.constant 0 : i32
    %c0_i32_0 = arith.constant 0 : i32
    %c0_i32_1 = arith.constant 0 : i32
    %c0_i32_2 = arith.constant 0 : i32
    return %c0_i32, %c0_i32_0, %c0_i32_1 : i32, i32, i32
  }
}

</mosaic_0001>

<llo_original>
// kernel: tpu_custom_call.1
$region0: #{tpu_custom_call.1}
  #allocation0 [shape = 'u32[]', space=smem, size = 0x4, offset = 0x4, fixed_abs, tag = 'smem constant byte address 0x4 - core index']
  #allocation1 [shape = 'u32[144,128]{1,0:T(1,128)}', space=vmem, size = 0x12000, scoped, tag = 'internal scratch']
  %s0 = inlined_call_operand.hbm [shape: f32[16,128], index: 0, kind: input, shape index: {}]
  %s1 = inlined_call_operand.hbm [shape: bf16[16,128], index: 1, kind: input, shape index: {}]
  %s2 = inlined_call_operand.hbm [shape: bf16[16,128], index: 2, kind: input, shape index: {}]
  %s3 = inlined_call_operand.hbm [shape: f32[1,8,128], index: 3, kind: output, shape index: {}]
  %s4 = sld [smem:[#allocation0]]
  $region38: #{tpu_custom_call.1} parent=0
    _
  %s6 = ssub.s32 1, %s4
  %s7 = scalar_select 0, %s6, %s4
  $region1: #{tpu_custom_call.1} parent=0
    #allocation2 [shape = 'u8[8192]{0}', space=vmem, size = 0x2000, scoped, tag = 'input window, operand 0, single buffered']
    #allocation3 [shape = 's32[1]{0}', space=sflag, size = 0x4, scoped, tag = 'scoped memory for tpu_custom_call.1']
    #allocation4 [shape = 's32[1]{0}', space=sflag, size = 0x4, scoped, tag = 'scoped memory for tpu_custom_call.1']
    #allocation5 [shape = 'u8[4096]{0}', space=vmem, size = 0x1000, scoped, tag = 'input window, operand 1, single buffered']
    #allocation6 [shape = 's32[1]{0}', space=sflag, size = 0x4, scoped, tag = 'scoped memory for tpu_custom_call.1']
    #allocation7 [shape = 'u8[4096]{0}', space=vmem, size = 0x1000, scoped, tag = 'input window, operand 2, single buffered']
    #allocation8 [shape = 'u8[4096]{0}', space=vmem, size = 0x1000, scoped, tag = 'output window, operand 0, single buffered']
    %8 = vsyncpa [#allocation3], 0
    %9 = vsyncpa [#allocation6], 0
    %10 = vsyncpa [#allocation4], 0
    // Predicated region
    $region2: #{tpu_custom_call.1} parent=1 // pred_check
      _
    $region3: #{tpu_custom_call.1} parent=1 // pred_check_branch
      %12 = sbr.rel (0) target = $region5
    $region4: #{tpu_custom_call.1} parent=1 // pred_region
      %s14 = ssub.s32 256, 256
      %15 = vsyncadd [#allocation3], %s14
      %s16 = sshll.u32 [#allocation2], 4
      %s17 = int_to_ptr.vmem [resolvable:$true] %s16
      %22 = dma.hbm_to_vmem [thread:$0]  %s0, 256, %s17, [#allocation3], 128, 128, 8
    $region5: #{tpu_custom_call.1} parent=1 // pred_fallthru
      _
    // Predicated region
    $region6: #{tpu_custom_call.1} parent=1 // pred_check
      _
    $region7: #{tpu_custom_call.1} parent=1 // pred_check_branch
      %24 = sbr.rel (0) target = $region9
    $region8: #{tpu_custom_call.1} parent=1 // pred_region
      %s26 = ssub.s32 128, 128
      %27 = vsyncadd [#allocation6], %s26
      %s28 = sshll.u32 [#allocation5], 4
      %s29 = int_to_ptr.vmem [resolvable:$true] %s28
      %34 = dma.hbm_to_vmem [thread:$0]  %s1, 128, %s29, [#allocation6], 64, 64, 4
    $region9: #{tpu_custom_call.1} parent=1 // pred_fallthru
      _
    // Predicated region
    $region10: #{tpu_custom_call.1} parent=1 // pred_check
      _
    $region11: #{tpu_custom_call.1} parent=1 // pred_check_branch
      %36 = sbr.rel (0) target = $region13
    $region12: #{tpu_custom_call.1} parent=1 // pred_region
      %s38 = ssub.s32 128, 128
      %39 = vsyncadd [#allocation6], %s38
      %s40 = sshll.u32 [#allocation7], 4
      %s41 = int_to_ptr.vmem [resolvable:$true] %s40
      %46 = dma.hbm_to_vmem [thread:$0]  %s2, 128, %s41, [#allocation6], 64, 64, 4
    $region13: #{tpu_custom_call.1} parent=1 // pred_fallthru
      _
    // Predicated region
    $region14: #{tpu_custom_call.1} parent=1 // pred_check
      _
    $region15: #{tpu_custom_call.1} parent=1 // pred_check_branch
      %48 = sbr.rel (0) target = $region17
    $region16: #{tpu_custom_call.1} parent=1 // pred_region
      %49 = dma.done [#allocation3], 256
    $region17: #{tpu_custom_call.1} parent=1 // pred_fallthru
      _
    // Predicated region
    $region18: #{tpu_custom_call.1} parent=1 // pred_check
      _
    $region19: #{tpu_custom_call.1} parent=1 // pred_check_branch
      %51 = sbr.rel (0) target = $region21
    $region20: #{tpu_custom_call.1} parent=1 // pred_region
      %52 = dma.done [#allocation6], 128
    $region21: #{tpu_custom_call.1} parent=1 // pred_fallthru
      _
    // Predicated region
    $region22: #{tpu_custom_call.1} parent=1 // pred_check
      _
    $region23: #{tpu_custom_call.1} parent=1 // pred_check_branch
      %54 = sbr.rel (0) target = $region25
    $region24: #{tpu_custom_call.1} parent=1 // pred_region
      %55 = dma.done [#allocation6], 128
    $region25: #{tpu_custom_call.1} parent=1 // pred_fallthru
      _
    %p56 = scmp.eq.s32.totalorder 0, 0
    // Predicated region
    $region26: #{tpu_custom_call.1} parent=1 // pred_check
      %p57 = pneg %p56
    $region27: #{tpu_custom_call.1} parent=1 // pred_check_branch
      %59 = sbr.rel (%p57) target = $region29
    $region28: #{tpu_custom_call.1} parent=1 // pred_region
      %60 = vst [vmem:[#allocation8] sm:$0xff] 0.0
    $region29: #{tpu_custom_call.1} parent=1 // pred_fallthru
      _
    %v61 = vld [vmem:[#allocation2] sm:$0xff]
    %v62 = vld [vmem:[#allocation2 + $0x8] sm:$0xff]
    %v63 = vld [vmem:[#allocation5] sm:$0xf]
    %v64 = vld [vmem:[#allocation5 + $0x4] sm:$0xf]
    %v65 = vld [vmem:[#allocation7] sm:$0xf]
    %v66 = vld [vmem:[#allocation7 + $0x4] sm:$0xf]
    %v67 = vunpack.c.l.bf16 %v63
    %v68 = vunpack.c.l.bf16 %v64
    %v69 = vunpack.c.l.bf16 %v65
    %v70 = vunpack.c.l.bf16 %v66
    %v71 = vand.u32 2147483647, %v61
    %v72 = vand.u32 2147483647, %v62
    %v73 = vsub.f32 0.0, %v71
    %v74 = vsub.f32 0.0, %v72
    %v75 = vmul.f32 %v73, 1.442695
    %v76 = vpow.pop %v75
    %v77 = vmul.f32 %v74, 1.442695
    %v78 = vpow.pop %v77
    %vm79 = vcmp.lt.f32.partialorder %v76, 0.001
    %vm80 = vcmp.lt.f32.partialorder %v78, 0.001
    %v81 = vmul.f32 %v76, 0.5
    %v82 = vmul.f32 %v78, 0.5
    %v83 = vmul.f32 %v81, %v76
    %v84 = vmul.f32 %v82, %v78
    %v85 = vsub.f32 %v76, %v83
    %v86 = vsub.f32 %v78, %v84
    %v87 = vadd.f32 %v76, 1.0
    %v88 = vadd.f32 %v78, 1.0
    %v89 = vlog2.pop %v87
    %v90 = vmul.f32 %v89, 0.6931472
    %v91 = vlog2.pop %v88
    %v92 = vmul.f32 %v91, 0.6931472
    %v93 = vsel %vm79, %v85, %v90
    %v94 = vsel %vm80, %v86, %v92
    %v95 = vmax.f32 %v61, 0.0
    %v96 = vmax.f32 %v62, 0.0
    %v97 = vmul.f32 %v61, %v67
    %v98 = vmul.f32 %v62, %v68
    %v99 = vsub.f32 %v95, %v97
    %v100 = vsub.f32 %v96, %v98
    %v101 = vadd.f32 %v99, %v93
    %v102 = vadd.f32 %v100, %v94
    %vm103 = vcmp.ge.f32.partialorder %v61, 0.0
    %vm104 = vcmp.ge.f32.partialorder %v62, 0.0
    %v105 = vsel %vm103, 1.0, %v76
    %v106 = vsel %vm104, 1.0, %v78
    %v107 = vrcp.pop %v87
    %v108 = vrcp.pop %v88
    %v109 = vmul.f32 %v105, %v107
    %v110 = vmul.f32 %v106, %v108
    %v111 = vmul.f32 %v109, %v69
    %v112 = vmul.f32 %v110, %v70
    %v113 = vmul.f32 %v67, %v69
    %v114 = vmul.f32 %v68, %v70
    %v115 = vmul.f32 %v101, %v69
    %v116 = vmul.f32 %v102, %v70
    %v117 = vadd.f32 %v115, %v116
    %v118 = vrot.slane %v117, 4
    %v119 = vadd.f32 %v117, %v118
    %v120 = vrot.slane %v119, 2
    %v121 = vadd.f32 %v119, %v120
    %v122 = vrot.slane %v121, 1
    %v123 = vadd.f32 %v121, %v122
    %v124 = vadd.f32 %v69, %v70
    %v125 = vrot.slane %v124, 4
    %v126 = vadd.f32 %v124, %v125
    %v127 = vrot.slane %v126, 2
    %v128 = vadd.f32 %v126, %v127
    %v129 = vrot.slane %v128, 1
    %v130 = vadd.f32 %v128, %v129
    %v131 = vmul.f32 %v111, %v113
    %v132 = vmul.f32 %v112, %v114
    %v133 = vadd.f32 %v131, %v132
    %v134 = vrot.slane %v133, 4
    %v135 = vadd.f32 %v133, %v134
    %v136 = vrot.slane %v135, 2
    %v137 = vadd.f32 %v135, %v136
    %v138 = vrot.slane %v137, 1
    %v139 = vadd.f32 %v137, %v138
    %v140 = vadd.f32 %v111, %v112
    %v141 = vrot.slane %v140, 4
    %v142 = vadd.f32 %v140, %v141
    %v143 = vrot.slane %v142, 2
    %v144 = vadd.f32 %v142, %v143
    %v145 = vrot.slane %v144, 1
    %v146 = vadd.f32 %v144, %v145
    %v147 = vadd.f32 %v113, %v114
    %v148 = vrot.slane %v147, 4
    %v149 = vadd.f32 %v147, %v148
    %v150 = vrot.slane %v149, 2
    %v151 = vadd.f32 %v149, %v150
    %v152 = vrot.slane %v151, 1
    %v153 = vadd.f32 %v151, %v152
    %vm154 = vcmask 1040384
    %v155 = vsel %vm154, %v123, %v130
    %vm156 = vcmask 1041408
    %v157 = vsel %vm156, %v155, %v139
    %vm158 = vcmask 1042432
    %v159 = vsel %vm158, %v157, %v146
    %vm160 = vcmask 1043456
    %v161 = vsel %vm160, %v159, %v153
    %vm162 = vcmask 1044480
    %v163 = vsel %vm162, %v161, 0.0
    %v164 = vld [vmem:[#allocation8] sm:$0xff]
    %v165 = vadd.f32 %v164, %v163
    %166 = vst [vmem:[#allocation8] sm:$0xff] %v165
    // Predicated region
    $region30: #{tpu_custom_call.1} parent=1 // pred_check
      _
    $region31: #{tpu_custom_call.1} parent=1 // pred_check_branch
      %168 = sbr.rel (0) target = $region33
    $region32: #{tpu_custom_call.1} parent=1 // pred_region
      %s170 = ssub.s32 128, 128
      %171 = vsyncadd [#allocation4], %s170
      %s173 = sshll.u32 [#allocation8], 4
      %s174 = int_to_ptr.vmem [resolvable:$true] %s173
      %176 = dma.vmem_to_hbm [thread:$0]  %s174, 128, %s3, [#allocation4]
    $region33: #{tpu_custom_call.1} parent=1 // pred_fallthru
      _
    // Predicated region
    $region34: #{tpu_custom_call.1} parent=1 // pred_check
      _
    $region35: #{tpu_custom_call.1} parent=1 // pred_check_branch
      %178 = sbr.rel (0) target = $region37
    $region36: #{tpu_custom_call.1} parent=1 // pred_region
      %179 = dma.done [#allocation4], 128
    $region37: #{tpu_custom_call.1} parent=1 // pred_fallthru
      _
    %180 = vsyncpa [#allocation3], 1
    %181 = vsyncpa [#allocation6], 1
    %182 = vsyncpa [#allocation4], 1

</llo_original>
